<compile_context>
chip_gen: v5e
topology: v5e:2x2
jax: 0.10.0
libtpu: 0.0.40
codegen_flags: <defaults>
</compile_context>

<pallas_src>
import functools

import jax
import jax.numpy as jnp
from jax import lax
from jax.experimental import pallas as pl
from jax.experimental.pallas import tpu as pltpu

EPS = 1e-5
LANE = 128
# Sized with headroom for v7x's 64 MiB physical VMEM (v5e/v6e have 128 MiB).
_VMEM_LIMIT = 48 * 1024 * 1024


# ---------------------------------------------------------------------------
# small helpers
# ---------------------------------------------------------------------------
def _round_up(n, m):
    return ((n + m - 1) // m) * m


def _pick_row_tile(rows, target):
    """Largest divisor of `rows` that is <= target and a multiple of 8."""
    if rows <= target:
        return rows
    for t in range(min(target, rows), 0, -1):
        if rows % t == 0 and t % 8 == 0:
            return t
    return rows  # fallback: single tile


def _pad2d(w, rows, cols):
    r, c = w.shape
    return jnp.pad(w, ((0, rows - r), (0, cols - c)))


def _pad1(v, n):
    return jnp.pad(v, (0, n - v.shape[0]))


def _pad_w2(w2, cp):
    kh, kw, ci, co = w2.shape
    w = jnp.pad(w2, ((0, 0), (0, 0), (0, cp - ci), (0, cp - co)))
    return w.reshape(kh * kw, cp, cp)            # tap-major, matches im2col order


def _compiler_params():
    return pltpu.CompilerParams(dimension_semantics=("parallel",),
                                vmem_limit_bytes=_VMEM_LIMIT)


# ---------------------------------------------------------------------------
# Pallas kernels
# ---------------------------------------------------------------------------
def _mm_stats_kernel(*refs, input_bn_relu):
    """y = (optionally relu(x*scale+shift)) @ w, plus per-tile channel sum/sumsq.

    The per-tile partial statistics let the caller finish BatchNorm outside the
    kernel (two-pass BN), so the row grid axis stays 'parallel'.
    """
    if input_bn_relu:
        x_ref, w_ref, sc_ref, sh_ref, y_ref, st_ref = refs
        x = jnp.maximum(x_ref[...] * sc_ref[...] + sh_ref[...], 0.0)   # f32
    else:
        x_ref, w_ref, y_ref, st_ref = refs
        x = x_ref[...]
    y = jnp.dot(x.astype(jnp.bfloat16), w_ref[...],
                preferred_element_type=jnp.float32)
    y_ref[...] = y
    st_ref[0, 0:1, :] = jnp.sum(y, axis=0, keepdims=True)
    st_ref[0, 1:2, :] = jnp.sum(y * y, axis=0, keepdims=True)


def _conv2_kernel(y1_ref, w2_ref, sc_ref, sh_ref, y2_ref, st_ref, pad_ref,
                  *, H, W, C):
    """Fused: BN1-apply + ReLU + zero-pad + 3x3 conv (9 shifted matmuls) + stats.

    One grid step == one batch element; the spatially-padded activation lives
    only in the VMEM scratch `pad_ref` (no HBM im2col).
    """
    h = jnp.maximum(y1_ref[0] * sc_ref[...] + sh_ref[...], 0.0)       # (H, W, C)
    pad_ref[...] = jnp.zeros_like(pad_ref)
    pad_ref[1:H + 1, 1:W + 1, :] = h

    acc = jnp.zeros((H * W, C), jnp.float32)
    for k in range(9):
        dy, dx = k // 3, k % 3
        t = pad_ref[dy:dy + H, dx:dx + W, :].reshape(H * W, C)
        acc = acc + jnp.dot(t.astype(jnp.bfloat16), w2_ref[k],
                            preferred_element_type=jnp.float32)

    y2_ref[0] = acc.reshape(H, W, C)
    st_ref[0, 0:1, :] = jnp.sum(acc, axis=0, keepdims=True)
    st_ref[0, 1:2, :] = jnp.sum(acc * acc, axis=0, keepdims=True)


def _combine_kernel(y3_ref, s_ref, sc3_ref, sh3_ref, scs_ref, shs_ref, o_ref):
    """out = relu( BN3-apply(y3) + BN_s-apply(shortcut) )   (elementwise)."""
    main = y3_ref[...] * sc3_ref[...] + sh3_ref[...]
    short = s_ref[...] * scs_ref[...] + shs_ref[...]
    o_ref[...] = jnp.maximum(main + short, 0.0)


# ---------------------------------------------------------------------------
# pallas_call wrappers
# ---------------------------------------------------------------------------
def _matmul_stats(x2d, w, scale=None, shift=None, *, row_tile):
    R, K = x2d.shape
    _, C = w.shape
    tr = _pick_row_tile(R, row_tile)
    nt = R // tr
    input_bn = scale is not None

    in_specs = [pl.BlockSpec((tr, K), lambda i: (i, 0)),
                pl.BlockSpec((K, C), lambda i: (0, 0))]      # resident weights
    args = [x2d, w]
    if input_bn:
        in_specs += [pl.BlockSpec((1, K), lambda i: (0, 0)),
                     pl.BlockSpec((1, K), lambda i: (0, 0))]
        args += [scale.reshape(1, K), shift.reshape(1, K)]

    y, stats = pl.pallas_call(
        functools.partial(_mm_stats_kernel, input_bn_relu=input_bn),
        out_shape=(jax.ShapeDtypeStruct((R, C), jnp.float32),
                   jax.ShapeDtypeStruct((nt, 2, C), jnp.float32)),
        grid=(nt,),
        in_specs=in_specs,
        out_specs=(pl.BlockSpec((tr, C), lambda i: (i, 0)),
                   pl.BlockSpec((1, 2, C), lambda i: (i, 0, 0))),
        compiler_params=_compiler_params(),
        cost_estimate=pl.CostEstimate(
            flops=int(2 * R * K * C), transcendentals=0,
            bytes_accessed=int(4 * R * (K + C) + 2 * K * C)),
    )(*args)
    return y, stats


def _conv2_3x3_fused(y1_4d, w2_flat, scale1, shift1):
    N, H, W, C = y1_4d.shape
    y2, stats = pl.pallas_call(
        functools.partial(_conv2_kernel, H=H, W=W, C=C),
        out_shape=(jax.ShapeDtypeStruct((N, H, W, C), jnp.float32),
                   jax.ShapeDtypeStruct((N, 2, C), jnp.float32)),
        grid=(N,),
        in_specs=[pl.BlockSpec((1, H, W, C), lambda n: (n, 0, 0, 0)),
                  pl.BlockSpec((9, C, C), lambda n: (0, 0, 0)),   # resident
                  pl.BlockSpec((1, C), lambda n: (0, 0)),
                  pl.BlockSpec((1, C), lambda n: (0, 0))],
        out_specs=(pl.BlockSpec((1, H, W, C), lambda n: (n, 0, 0, 0)),
                   pl.BlockSpec((1, 2, C), lambda n: (n, 0, 0))),
        scratch_shapes=[pltpu.VMEM((H + 2, W + 2, C), jnp.float32)],
        compiler_params=_compiler_params(),
        cost_estimate=pl.CostEstimate(
            flops=int(2 * N * H * W * 9 * C * C), transcendentals=0,
            bytes_accessed=int(8 * N * H * W * C + 2 * 9 * C * C)),
    )(y1_4d, w2_flat, scale1.reshape(1, C), shift1.reshape(1, C))
    return y2, stats


def _bn_add_relu(y3, s, sc3, sh3, scs, shs, *, row_tile):
    R, C = y3.shape
    tr = _pick_row_tile(R, row_tile)
    return pl.pallas_call(
        _combine_kernel,
        out_shape=jax.ShapeDtypeStruct((R, C), jnp.float32),
        grid=(R // tr,),
        in_specs=[pl.BlockSpec((tr, C), lambda i: (i, 0)),
                  pl.BlockSpec((tr, C), lambda i: (i, 0)),
                  pl.BlockSpec((1, C), lambda i: (0, 0)),
                  pl.BlockSpec((1, C), lambda i: (0, 0)),
                  pl.BlockSpec((1, C), lambda i: (0, 0)),
                  pl.BlockSpec((1, C), lambda i: (0, 0))],
        out_specs=pl.BlockSpec((tr, C), lambda i: (i, 0)),
        compiler_params=_compiler_params(),
        cost_estimate=pl.CostEstimate(flops=int(4 * R * C), transcendentals=0,
                                      bytes_accessed=int(12 * R * C)),
    )(y3, s, sc3.reshape(1, C), sh3.reshape(1, C),
      scs.reshape(1, C), shs.reshape(1, C))


# ---------------------------------------------------------------------------
# two-pass BatchNorm finalisation (tiny, plain JAX)
# ---------------------------------------------------------------------------
def _bn_scale_shift(partial_stats, count, gamma, beta, eps=EPS):
    s = jnp.sum(partial_stats, axis=0)            # (2, C)
    mean = s[0] / count
    var = jnp.maximum(s[1] / count - mean * mean, 0.0)
    scale = gamma * lax.rsqrt(var + eps)
    shift = beta - mean * scale
    return scale, shift


# ---------------------------------------------------------------------------
# Glue: wrapper-side im2col, only used for the stride>1 fallback
# ---------------------------------------------------------------------------
def _im2col_3x3(x, stride):
    N, H, W, C = x.shape
    Ho = (H + 2 - 3) // stride + 1
    Wo = (W + 2 - 3) // stride + 1
    xp = jnp.pad(x, ((0, 0), (1, 1), (1, 1), (0, 0)))
    cols = []
    for dy in range(3):
        for dx in range(3):
            cols.append(xp[:, dy:dy + stride * (Ho - 1) + 1:stride,
                           dx:dx + stride * (Wo - 1) + 1:stride, :])
    patches = jnp.concatenate(cols, axis=-1)
    return patches.reshape(N * Ho * Wo, 9 * C), Ho, Wo


# ---------------------------------------------------------------------------
# Bottleneck forward (Pallas)
# ---------------------------------------------------------------------------
def bottleneck_forward(x_nchw, params, stride, row_tile=1024):
    # TODO(synk): keep activations NHWC across chained blocks; the boundary
    # transposes are only needed once per model, not per block.
    x = jnp.transpose(x_nchw, (0, 2, 3, 1)).astype(jnp.float32)     # NCHW->NHWC
    N, H, W, Cin = x.shape
    P = params["w1"].shape[1]
    Cout = params["w3"].shape[1]
    has_proj = (stride != 1) or (Cin != Cout)

    Cin_p, P_p, Cout_p = (_round_up(c, LANE) for c in (Cin, P, Cout))
    Ho = (H + 2 - 3) // stride + 1
    Wo = (W + 2 - 3) // stride + 1

    # lane-dense (x128) zero-padded weights / BN params (pads stay inert zeros)
    w1 = _pad2d(params["w1"], Cin_p, P_p).astype(jnp.bfloat16)
    w2 = _pad_w2(params["w2"], P_p).astype(jnp.bfloat16)            # (9,P_p,P_p)
    w3 = _pad2d(params["w3"], P_p, Cout_p).astype(jnp.bfloat16)
    g1, b1 = _pad1(params["g1"], P_p), _pad1(params["b1"], P_p)
    g2, b2 = _pad1(params["g2"], P_p), _pad1(params["b2"], P_p)
    g3, b3 = _pad1(params["g3"], Cout_p), _pad1(params["b3"], Cout_p)

    xp = jnp.pad(x, ((0, 0), (0, 0), (0, 0), (0, Cin_p - Cin)))
    x2d = xp.reshape(N * H * W, Cin_p)

    # ---- conv1 (1x1): tiled matmul + BN1 partial stats ----------------------
    y1, st1 = _matmul_stats(x2d, w1, row_tile=row_tile)
    sc1, sh1 = _bn_scale_shift(st1, N * H * W, g1, b1)

    # ---- conv2 (3x3, pad=1) fused with BN1-apply + ReLU ---------------------
    if stride == 1:
        y2, st2 = _conv2_3x3_fused(y1.reshape(N, H, W, P_p), w2, sc1, sh1)
        y2_2d = y2.reshape(N * Ho * Wo, P_p)
    else:
        # TODO(synk): fuse the strided 3x3 conv like the stride=1 path (needs a
        # strided halo DMA); fall back to a wrapper im2col + tiled matmul.
        h1 = jnp.maximum(y1 * sc1 + sh1, 0.0).reshape(N, H, W, P_p)
        patches, _, _ = _im2col_3x3(h1, stride)
        y2_2d, st2 = _matmul_stats(patches, w2.reshape(9 * P_p, P_p),
                                   row_tile=row_tile)
    sc2, sh2 = _bn_scale_shift(st2, N * Ho * Wo, g2, b2)

    # ---- conv3 (1x1) fused with BN2-apply + ReLU on its input ---------------
    y3, st3 = _matmul_stats(y2_2d, w3, scale=sc2, shift=sh2, row_tile=row_tile)
    sc3, sh3 = _bn_scale_shift(st3, N * Ho * Wo, g3, b3)

    # ---- shortcut ------------------------------------------------------------
    if has_proj:
        ws = _pad2d(params["ws"], Cin_p, Cout_p).astype(jnp.bfloat16)
        gs, bs = _pad1(params["gs"], Cout_p), _pad1(params["bs"], Cout_p)
        xs = xp[:, ::stride, ::stride, :].reshape(N * Ho * Wo, Cin_p)
        ys, sts = _matmul_stats(xs, ws, row_tile=row_tile)
        scs, shs = _bn_scale_shift(sts, N * Ho * Wo, gs, bs)
        s2d = ys
    else:
        s2d = x2d                                # identity: Cin_p == Cout_p
        scs = jnp.ones((Cout_p,), jnp.float32)
        shs = jnp.zeros((Cout_p,), jnp.float32)

    # ---- BN3-apply + shortcut-BN-apply + add + ReLU --------------------------
    out2d = _bn_add_relu(y3, s2d, sc3, sh3, scs, shs, row_tile=row_tile)
    out = out2d.reshape(N, Ho, Wo, Cout_p)[..., :Cout]
    return jnp.transpose(out, (0, 3, 1, 2))                          # -> NCHW


# ---------------------------------------------------------------------------
# Pure-JAX reference (lax.conv) for verification
# ---------------------------------------------------------------------------
def _bn_ref(y, gamma, beta, eps=EPS):
    mean = jnp.mean(y, axis=(0, 1, 2), keepdims=True)
    var = jnp.mean(jnp.square(y - mean), axis=(0, 1, 2), keepdims=True)
    return (y - mean) * lax.rsqrt(var + eps) * gamma + beta


def _conv_ref(x, w_hwio, stride, padding):
    return lax.conv_general_dilated(
        x, w_hwio, window_strides=(stride, stride), padding=padding,
        dimension_numbers=("NHWC", "HWIO", "NHWC"))


def bottleneck_ref(x_nchw, params, stride):
    x = jnp.transpose(x_nchw, (0, 2, 3, 1)).astype(jnp.float32)
    Cin = x.shape[-1]
    P = params["w1"].shape[1]
    Cout = params["w3"].shape[1]
    has_proj = (stride != 1) or (Cin != Cout)

    h = _conv_ref(x, params["w1"].reshape(1, 1, Cin, P), 1, [(0, 0), (0, 0)])
    h = jax.nn.relu(_bn_ref(h, params["g1"], params["b1"]))
    h = _conv_ref(h, params["w2"], stride, [(1, 1), (1, 1)])
    h = jax.nn.relu(_bn_ref(h, params["g2"], params["b2"]))
    h = _conv_ref(h, params["w3"].reshape(1, 1, P, Cout), 1, [(0, 0), (0, 0)])
    h = _bn_ref(h, params["g3"], params["b3"])
    if has_proj:
        s = _conv_ref(x, params["ws"].reshape(1, 1, Cin, Cout), stride,
                      [(0, 0), (0, 0)])
        s = _bn_ref(s, params["gs"], params["bs"])
    else:
        s = x
    out = jax.nn.relu(h + s)
    return jnp.transpose(out, (0, 3, 1, 2))


# ---------------------------------------------------------------------------
# Deterministic parameter init + demo
# ---------------------------------------------------------------------------
def make_params(key, in_planes, planes):
    cout = 4 * planes
    ks = jax.random.split(key, 12)
    f = lambda k, s: (0.1 * jax.random.normal(k, s)).astype(jnp.float32)
    return {
        "w1": f(ks[0], (in_planes, planes)),
        "g1": 1.0 + f(ks[1], (planes,)), "b1": f(ks[2], (planes,)),
        "w2": f(ks[3], (3, 3, planes, planes)),        # [kh, kw, Cin, Cout]
        "g2": 1.0 + f(ks[4], (planes,)), "b2": f(ks[5], (planes,)),
        "w3": f(ks[6], (planes, cout)),
        "g3": 1.0 + f(ks[7], (cout,)), "b3": f(ks[8], (cout,)),
        "ws": f(ks[9], (in_planes, cout)),
        "gs": 1.0 + f(ks[10], (cout,)), "bs": f(ks[11], (cout,)),
    }


if __name__ == "__main__":
    key = jax.random.PRNGKey(0)

    # (N, in_planes, planes, H, W, stride)
    cases = [
        (2, 4, 4, 16, 16, 1),    # projection shortcut, fused 3x3 path
        (2, 16, 4, 16, 16, 1),   # identity shortcut
        (2, 8, 4, 16, 16, 2),    # strided projection (im2col fallback for conv2)
    ]
    for idx, (N, cin, planes, H, W, stride) in enumerate(cases):
        k_x, k_p, key = jax.random.split(key, 3)
        x = jax.random.normal(k_x, (N, cin, H, W), dtype=jnp.float32)
        params = make_params(k_p, cin, planes)

        out = jax.block_until_ready(
            bottleneck_forward(x, params, stride, row_tile=128))
        ref = jax.block_until_ready(bottleneck_ref(x, params, stride))

        assert out.shape == ref.shape, (idx, out.shape, ref.shape)
        max_err = float(jnp.max(jnp.abs(out - ref)))
        mean_err = float(jnp.mean(jnp.abs(out - ref)))
        # bf16 MXU inputs bound precision vs the all-f32 reference.
        assert max_err < 1e-1 and mean_err < 1e-2, (idx, max_err, mean_err)

    print("KERNEL_OK")
</pallas_src>

<mosaic_0001>
module attributes {stable_mosaic.version = 11 : i64} {
  func.func @_mm_stats_kernel(%arg0: i32, %arg1: memref<128x128xf32, #tpu.memory_space<vmem>>, %arg2: memref<128x128xbf16, #tpu.memory_space<vmem>>, %arg3: memref<128x128xf32, #tpu.memory_space<vmem>>, %arg4: memref<1x2x128xf32, #tpu.memory_space<vmem>>) attributes {dimension_semantics = [#tpu.dimension_semantics<parallel>], iteration_bounds = array<i64: 4>, scalar_prefetch = 0 : i64, scratch_operands = 0 : i64, tpu.core_type = #tpu.core_type<tc>, window_params = [{transform_indices = @transform_0, window_bounds = array<i64: 128, 128>}, {pipeline_mode = #tpu.pipeline_mode<synchronous>, transform_indices = @transform_1, window_bounds = array<i64: 128, 128>}, {transform_indices = @transform_2, window_bounds = array<i64: 128, 128>}, {transform_indices = @transform_3, window_bounds = array<i64: 1, 2, 128>}]} {
    %c0 = arith.constant 0 : index
    %c0_0 = arith.constant 0 : index
    %0 = vector.load %arg1[%c0, %c0_0] : memref<128x128xf32, #tpu.memory_space<vmem>>, vector<128x128xf32>
    %1 = arith.truncf %0 : vector<128x128xf32> to vector<128x128xbf16>
    %c0_1 = arith.constant 0 : index
    %c0_2 = arith.constant 0 : index
    %2 = vector.load %arg2[%c0_1, %c0_2] : memref<128x128xbf16, #tpu.memory_space<vmem>>, vector<128x128xbf16>
    %cst = arith.constant dense<0.000000e+00> : vector<128x128xf32>
    %3 = tpu.matmul %1, %2, %cst {dimension_numbers = #tpu.dot_dimension_numbers<[1], [0], [0], [1], [0, 0, 1, 1], [], []>} : vector<128x128xbf16>, vector<128x128xbf16>, vector<128x128xf32> -> vector<128x128xf32>
    %c0_3 = arith.constant 0 : index
    %c0_4 = arith.constant 0 : index
    %4 = vector.load %arg3[%c0_3, %c0_4] : memref<128x128xf32, #tpu.memory_space<vmem>>, vector<128x128xf32>
    tpu.vector_store %arg3[%c0_3, %c0_4], %3 {strides = array<i32>} : memref<128x128xf32, #tpu.memory_space<vmem>>, vector<128x128xf32>,
    %cst_5 = arith.constant dense<0.000000e+00> : vector<128xf32>
    %5 = vector.multi_reduction <add>, %3, %cst_5 [0] : vector<128x128xf32> to vector<128xf32>
    %6 = vector.shape_cast %5 : vector<128xf32> to vector<1x128xf32>
    %c0_6 = arith.constant 0 : index
    %c0_7 = arith.constant 0 : index
    %c0_8 = arith.constant 0 : index
    %7 = vector.load %arg4[%c0_6, %c0_7, %c0_8] : memref<1x2x128xf32, #tpu.memory_space<vmem>>, vector<1x1x128xf32>
    %8 = vector.shape_cast %7 : vector<1x1x128xf32> to vector<1x128xf32>
    %9 = vector.shape_cast %6 : vector<1x128xf32> to vector<1x1x128xf32>
    tpu.vector_store %arg4[%c0_6, %c0_7, %c0_8], %9 {strides = array<i32>} : memref<1x2x128xf32, #tpu.memory_space<vmem>>, vector<1x1x128xf32>,
    %10 = arith.mulf %3, %3 : vector<128x128xf32>
    %cst_9 = arith.constant dense<0.000000e+00> : vector<128xf32>
    %11 = vector.multi_reduction <add>, %10, %cst_9 [0] : vector<128x128xf32> to vector<128xf32>
    %12 = vector.shape_cast %11 : vector<128xf32> to vector<1x128xf32>
    %c0_10 = arith.constant 0 : index
    %c1 = arith.constant 1 : index
    %c0_11 = arith.constant 0 : index
    %13 = vector.load %arg4[%c0_10, %c1, %c0_11] : memref<1x2x128xf32, #tpu.memory_space<vmem>>, vector<1x1x128xf32>
    %14 = vector.shape_cast %13 : vector<1x1x128xf32> to vector<1x128xf32>
    %15 = vector.shape_cast %12 : vector<1x128xf32> to vector<1x1x128xf32>
    tpu.vector_store %arg4[%c0_10, %c1, %c0_11], %15 {strides = array<i32>} : memref<1x2x128xf32, #tpu.memory_space<vmem>>, vector<1x1x128xf32>,
    return
  }
  func.func @transform_0(%arg0: i32) -> (i32, i32) {
    %c0_i32 = arith.constant 0 : i32
    %c0_i32_0 = arith.constant 0 : i32
    return %arg0, %c0_i32 : i32, i32
  }
  func.func @transform_1(%arg0: i32) -> (i32, i32) {
    %c0_i32 = arith.constant 0 : i32
    %c0_i32_0 = arith.constant 0 : i32
    %c0_i32_1 = arith.constant 0 : i32
    return %c0_i32, %c0_i32_0 : i32, i32
  }
  func.func @transform_2(%arg0: i32) -> (i32, i32) {
    %c0_i32 = arith.constant 0 : i32
    %c0_i32_0 = arith.constant 0 : i32
    return %arg0, %c0_i32 : i32, i32
  }
  func.func @transform_3(%arg0: i32) -> (i32, i32, i32) {
    %c0_i32 = arith.constant 0 : i32
    %c0_i32_0 = arith.constant 0 : i32
    %c0_i32_1 = arith.constant 0 : i32
    return %arg0, %c0_i32, %c0_i32_0 : i32, i32, i32
  }
}

</mosaic_0001>

<llo_original>
// kernel: tpu_custom_call.1
$region0: #{tpu_custom_call.1}
  #allocation0 [shape = 'u32[]', space=smem, size = 0x4, offset = 0x4, fixed_abs, tag = 'smem constant byte address 0x4 - core index']
  #allocation1 [shape = 'u32[72,128]{1,0:T(1,128)}', space=vmem, size = 0x9000, scoped, tag = 'internal scratch']
  %s0 = inlined_call_operand.hbm [shape: f32[512,128], index: 0, kind: input, shape index: {}]
  %s1 = inlined_call_operand.hbm [shape: bf16[128,128], index: 1, kind: input, shape index: {}]
  %s2 = inlined_call_operand.hbm [shape: f32[512,128], index: 2, kind: output, shape index: {0}]
  %s3 = inlined_call_operand.hbm [shape: f32[4,2,128], index: 3, kind: output, shape index: {1}]
  %4 = xla_tuple %s2, %s3
  %s5 = sld [smem:[#allocation0]]
  $region57: #{tpu_custom_call.1} parent=0
    _
  %s7 = ssub.s32 1, %s5
  %s8 = scalar_select 0, %s7, %s5
  $region1: #{tpu_custom_call.1} parent=0
    #allocation2 [shape = 'u8[131072]{0}', space=vmem, size = 0x20000, scoped, tag = 'input window, operand 0']
    #allocation3 [shape = 's32[2]{0}', space=sflag, size = 0x8, scoped, tag = 'scoped memory for tpu_custom_call.1']
    #allocation4 [shape = 's32[2]{0}', space=sflag, size = 0x8, scoped, tag = 'scoped memory for tpu_custom_call.1']
    #allocation5 [shape = 'u8[32768]{0}', space=vmem, size = 0x8000, scoped, tag = 'input window, operand 1, single buffered']
    #allocation6 [shape = 's32[1]{0}', space=sflag, size = 0x4, scoped, tag = 'scoped memory for tpu_custom_call.1']
    #allocation7 [shape = 'u8[131072]{0}', space=vmem, size = 0x20000, scoped, tag = 'output window, operand 0']
    #allocation8 [shape = 'u8[2048]{0}', space=vmem, size = 0x800, scoped, tag = 'output window, operand 1']
    #allocation9 [shape = 's32[2]{0}', space=sflag, size = 0x8, scoped, tag = 'scoped memory for tpu_custom_call.1']
    %9 = vsyncpa [#allocation3], 0
    %s10 = scalar_lea.sflag [#allocation3], 1
    %11 = vsyncpa %s10, 0
    %12 = vsyncpa [#allocation6], 0
    %13 = vsyncpa [#allocation4], 0
    %s14 = scalar_lea.sflag [#allocation4], 1
    %15 = vsyncpa %s14, 0
    %16 = vsyncpa [#allocation9], 0
    %s17 = scalar_lea.sflag [#allocation9], 1
    %18 = vsyncpa %s17, 0
    loop: start=0, step=1, limit=6
    $region2: #{tpu_custom_call.1} parent=1 // loop_pre_header
      _
    $region3: #{tpu_custom_call.1} parent=1 // loop_header
      %s20 = sphi 0, %s24
      %p21 = scmp.ge.s32.totalorder %s20, 6
      %s30 = sphi 0, %s32
      %s33 = sphi 0, %s30
      %s34 = sphi 0, %s33
      %s50 = sphi 0, %s34
      %s54 = sphi 0, %s54
      %s56 = sphi 0, %s54
      %s57 = sphi 0, %s56
      %s71 = sphi 0, %s57
      %s77 = sphi 0, %s79
      %s80 = sphi 0, %s77
      %s81 = sphi 0, %s80
      %s97 = sphi 0, %s81
      %s103 = sphi 0, %s105
      %s106 = sphi 0, %s103
      %s107 = sphi 0, %s106
      %s123 = sphi 0, %s107
    $region4: #{tpu_custom_call.1} parent=1 // loop_header_branch
      %23 = sbr.rel (%p21) target = $region8
    $region5: #{tpu_custom_call.1} parent=1 // loop_body
      %s25 = ssub.s32 %s20, 1
      %s26 = ssub.s32 %s20, 2
      %s27 = sadd.s32 %s20, 1
      %s28 = ssub.s32 %s20, %s27
      %p29 = scmp.eq.s32.totalorder %s28, 0
      %s31 = sadd.s32 %s30, 1
      %s32 = scalar_select %p29, %s30, %s31
      %p35 = pneg %p29
      %p36 = scmp.eq.s32.totalorder %s20, 3
      %p37 = por %p35, %p36
      %p38 = scmp.ne.s32.totalorder %s30, %s33
      %p39 = scmp.eq.s32.totalorder %s20, 0
      %p40 = por %p38, %p39
      %p41 = scmp.ne.s32.totalorder %s30, %s33
      %p42 = scmp.eq.s32.totalorder %s25, 3
      %p43 = por %p41, %p42
      %p44 = scmp.ne.s32.totalorder %s33, %s34
      %p45 = scmp.eq.s32.totalorder %s25, 0
      %p46 = por %p44, %p45
      %p47 = scmp.ne.s32.totalorder %s33, %s34
      %p48 = scmp.eq.s32.totalorder %s26, 3
      %p49 = por %p47, %p48
      %p51 = scmp.ne.s32.totalorder %s34, %s50
      %p52 = scmp.eq.s32.totalorder %s26, 0
      %p53 = por %p51, %p52
      %s55 = sadd.s32 %s54, 1
      %p58 = scmp.eq.s32.totalorder %s20, 3
      %p59 = scmp.ne.s32.totalorder %s54, %s56
      %p60 = scmp.eq.s32.totalorder %s20, 0
      %p61 = por %p59, %p60
      %p62 = scmp.ne.s32.totalorder %s54, %s56
      %p63 = scmp.eq.s32.totalorder %s25, 3
      %p64 = por %p62, %p63
      %p65 = scmp.ne.s32.totalorder %s56, %s57
      %p66 = scmp.eq.s32.totalorder %s25, 0
      %p67 = por %p65, %p66
      %p68 = scmp.ne.s32.totalorder %s56, %s57
      %p69 = scmp.eq.s32.totalorder %s26, 3
      %p70 = por %p68, %p69
      %p72 = scmp.ne.s32.totalorder %s57, %s71
      %p73 = scmp.eq.s32.totalorder %s26, 0
      %p74 = por %p72, %p73
      %s75 = ssub.s32 %s20, %s27
      %p76 = scmp.eq.s32.totalorder %s75, 0
      %s78 = sadd.s32 %s77, 1
      %s79 = scalar_select %p76, %s77, %s78
      %p82 = pneg %p76
      %p83 = scmp.eq.s32.totalorder %s20, 3
      %p84 = por %p82, %p83
      %p85 = scmp.ne.s32.totalorder %s77, %s80
      %p86 = scmp.eq.s32.totalorder %s20, 0
      %p87 = por %p85, %p86
      %p88 = scmp.ne.s32.totalorder %s77, %s80
      %p89 = scmp.eq.s32.totalorder %s25, 3
      %p90 = por %p88, %p89
      %p91 = scmp.ne.s32.totalorder %s80, %s81
      %p92 = scmp.eq.s32.totalorder %s25, 0
      %p93 = por %p91, %p92
      %p94 = scmp.ne.s32.totalorder %s80, %s81
      %p95 = scmp.eq.s32.totalorder %s26, 3
      %p96 = por %p94, %p95
      %p98 = scmp.ne.s32.totalorder %s81, %s97
      %p99 = scmp.eq.s32.totalorder %s26, 0
      %p100 = por %p98, %p99
      %s101 = ssub.s32 %s20, %s27
      %p102 = scmp.eq.s32.totalorder %s101, 0
      %s104 = sadd.s32 %s103, 1
      %s105 = scalar_select %p102, %s103, %s104
      %p108 = pneg %p102
      %p109 = scmp.eq.s32.totalorder %s20, 3
      %p110 = por %p108, %p109
      %p111 = scmp.ne.s32.totalorder %s103, %s106
      %p112 = scmp.eq.s32.totalorder %s20, 0
      %p113 = por %p111, %p112
      %p114 = scmp.ne.s32.totalorder %s103, %s106
      %p115 = scmp.eq.s32.totalorder %s25, 3
      %p116 = por %p114, %p115
      %p117 = scmp.ne.s32.totalorder %s106, %s107
      %p118 = scmp.eq.s32.totalorder %s25, 0
      %p119 = por %p117, %p118
      %p120 = scmp.ne.s32.totalorder %s106, %s107
      %p121 = scmp.eq.s32.totalorder %s26, 3
      %p122 = por %p120, %p121
      %p124 = scmp.ne.s32.totalorder %s107, %s123
      %p125 = scmp.eq.s32.totalorder %s26, 0
      %p126 = por %p124, %p125
      %p127 = scmp.le.s32.totalorder 1, %s20
      %p128 = scmp.lt.s32.totalorder %s20, 5
      %p129 = pnand %p127, %p128
      %p130 = pneg %p129
      // Predicated region
      $region9: #{tpu_custom_call.1} parent=5 // pred_check
        _
      $region10: #{tpu_custom_call.1} parent=5 // pred_check_branch
        %132 = sbr.rel (%p129) target = $region12
      $region11: #{tpu_custom_call.1} parent=5 // pred_region
        %s133 = ssub.s32 %s20, 1
        // Predicated region
        $region13: #{tpu_custom_call.1} parent=11 // pred_check
          %p134 = pneg %p67
        $region14: #{tpu_custom_call.1} parent=11 // pred_check_branch
          %136 = sbr.rel (%p134) target = $region16
        $region15: #{tpu_custom_call.1} parent=11 // pred_region
          %138 = vsyncadd [#allocation6], 0
          %s139 = sshll.u32 %s1, 4
          %s140 = int_to_ptr.hbm [resolvable:$true] %s139
          %s141 = sshll.u32 [#allocation5], 4
          %s142 = int_to_ptr.vmem [resolvable:$true] %s141
          %147 = dma.hbm_to_vmem [thread:$0]  %s140, 1024, %s142, [#allocation6], 64, 64, 4
        $region16: #{tpu_custom_call.1} parent=11 // pred_fallthru
          _
      $region12: #{tpu_custom_call.1} parent=5 // pred_fallthru
        _
      %p148 = scmp.lt.s32.totalorder %s20, 4
      // Predicated region
      $region17: #{tpu_custom_call.1} parent=5 // pred_check
        %p149 = pneg %p148
      $region18: #{tpu_custom_call.1} parent=5 // pred_check_branch
        %151 = sbr.rel (%p149) target = $region20
      $region19: #{tpu_custom_call.1} parent=5 // pred_region
        // Predicated region
        $region21: #{tpu_custom_call.1} parent=19 // pred_check
          %p152 = pneg %p40
        $region22: #{tpu_custom_call.1} parent=19 // pred_check_branch
          %154 = sbr.rel (%p152) target = $region24
        $region23: #{tpu_custom_call.1} parent=19 // pred_region
          %s155 = sand.u32 %s30, 1
          %s156 = scalar_lea.sflag [#allocation3], %s155
          %s157 = sand.u32 %s30, 1
          %s158 = smul.addr %s157, 128
          %s159 = scalar_lea.vmem [#allocation2], %s158
          %s160 = smul.u32 16, %s20
          %162 = vsyncadd %s156, 0
          %s163 = smul.addr %s160, 8
          %s164 = scalar_lea.hbm %s0, %s163
          %s165 = sshll.u32 %s164, 4
          %s166 = int_to_ptr.hbm [resolvable:$true] %s165
          %s167 = sshll.u32 %s159, 4
          %s168 = int_to_ptr.vmem [resolvable:$true] %s167
          %173 = dma.hbm_to_vmem [thread:$0]  %s166, 2048, %s168, %s156, 128, 128, 8
        $region24: #{tpu_custom_call.1} parent=19 // pred_fallthru
          _
      $region20: #{tpu_custom_call.1} parent=5 // pred_fallthru
        _
      %p174 = scmp.le.s32.totalorder 1, %s20
      %p175 = scmp.lt.s32.totalorder %s20, 5
      %p176 = pnand %p174, %p175
      %p177 = pneg %p176
      // Predicated region
      $region25: #{tpu_custom_call.1} parent=5 // pred_check
        _
      $region26: #{tpu_custom_call.1} parent=5 // pred_check_branch
        %179 = sbr.rel (%p176) target = $region28
      $region27: #{tpu_custom_call.1} parent=5 // pred_region
        %s180 = ssub.s32 %s20, 1
        %s181 = sand.u32 %s33, 1
        %s182 = scalar_lea.sflag [#allocation3], %s181
        %s183 = sand.u32 %s33, 1
        %s184 = smul.addr %s183, 128
        %s185 = scalar_lea.vmem [#allocation2], %s184
        // Predicated region
        $region29: #{tpu_custom_call.1} parent=27 // pred_check
          %p186 = pneg %p46
        $region30: #{tpu_custom_call.1} parent=27 // pred_check_branch
          %188 = sbr.rel (%p186) target = $region32
        $region31: #{tpu_custom_call.1} parent=27 // pred_region
          %190 = dma.done %s182, 2048
        $region32: #{tpu_custom_call.1} parent=27 // pred_fallthru
          _
        // Predicated region
        $region33: #{tpu_custom_call.1} parent=27 // pred_check
          %p191 = pneg %p67
        $region34: #{tpu_custom_call.1} parent=27 // pred_check_branch
          %193 = sbr.rel (%p191) target = $region36
        $region35: #{tpu_custom_call.1} parent=27 // pred_region
          %195 = dma.done [#allocation6], 1024
        $region36: #{tpu_custom_call.1} parent=27 // pred_fallthru
          _
        %s196 = sand.u32 %s33, 1
        %s197 = scalar_lea.sflag [#allocation3], %s196
        %s198 = sand.u32 %s33, 1
        %s199 = smul.addr %s198, 128
        %s200 = scalar_lea.vmem [#allocation2], %s199
        %p201 = pneg %p46
        %p202 = pneg %p43
        %p203 = pneg %p67
        %p204 = pneg %p64
        %p205 = pneg %p93
        %p206 = pneg %p90
        %s207 = sand.u32 %s80, 1
        %s208 = scalar_lea.sflag [#allocation4], %s207
        %s209 = sand.u32 %s80, 1
        %s210 = smul.addr %s209, 128
        %s211 = scalar_lea.vmem [#allocation7], %s210
        %p212 = pneg %p119
        %p213 = pneg %p116
        %s214 = sand.u32 %s106, 1
        %s215 = scalar_lea.sflag [#allocation9], %s214
        %s216 = sand.u32 %s106, 1
        %s217 = smul.addr %s216, 2
        %s218 = scalar_lea.vmem [#allocation8], %s217
        %s219 = smul.u32 16, %s25
        %s220 = smul.u32 16, %s25
        %v221 = vld [vmem:[%s185] sm:$0xff]
        %v222 = vld [vmem:[%s185 + $0x8] sm:$0xff]
        %v223 = vld [vmem:[%s185 + $0x10] sm:$0xff]
        %v224 = vld [vmem:[%s185 + $0x18] sm:$0xff]
        %v225 = vld [vmem:[%s185 + $0x20] sm:$0xff]
        %v226 = vld [vmem:[%s185 + $0x28] sm:$0xff]
        %v227 = vld [vmem:[%s185 + $0x30] sm:$0xff]
        %v228 = vld [vmem:[%s185 + $0x38] sm:$0xff]
        %v229 = vld [vmem:[%s185 + $0x40] sm:$0xff]
        %v230 = vld [vmem:[%s185 + $0x48] sm:$0xff]
        %v231 = vld [vmem:[%s185 + $0x50] sm:$0xff]
        %v232 = vld [vmem:[%s185 + $0x58] sm:$0xff]
        %v233 = vld [vmem:[%s185 + $0x60] sm:$0xff]
        %v234 = vld [vmem:[%s185 + $0x68] sm:$0xff]
        %v235 = vld [vmem:[%s185 + $0x70] sm:$0xff]
        %v236 = vld [vmem:[%s185 + $0x78] sm:$0xff]
        %v237 = vpack.c.bf16 %v222, %v221
        %v238 = vpack.c.bf16 %v224, %v223
        %v239 = vpack.c.bf16 %v226, %v225
        %v240 = vpack.c.bf16 %v228, %v227
        %v241 = vpack.c.bf16 %v230, %v229
        %v242 = vpack.c.bf16 %v232, %v231
        %v243 = vpack.c.bf16 %v234, %v233
        %v244 = vpack.c.bf16 %v236, %v235
        %v245 = vld [vmem:[#allocation5] sm:$0xf]
        %v246 = vld [vmem:[#allocation5 + $0x4] sm:$0xf]
        %v247 = vld [vmem:[#allocation5 + $0x8] sm:$0xf]
        %v248 = vld [vmem:[#allocation5 + $0xc] sm:$0xf]
        %v249 = vld [vmem:[#allocation5 + $0x10] sm:$0xf]
        %v250 = vld [vmem:[#allocation5 + $0x14] sm:$0xf]
        %v251 = vld [vmem:[#allocation5 + $0x18] sm:$0xf]
        %v252 = vld [vmem:[#allocation5 + $0x1c] sm:$0xf]
        %v253 = vld [vmem:[#allocation5 + $0x20] sm:$0xf]
        %v254 = vld [vmem:[#allocation5 + $0x24] sm:$0xf]
        %v255 = vld [vmem:[#allocation5 + $0x28] sm:$0xf]
        %v256 = vld [vmem:[#allocation5 + $0x2c] sm:$0xf]
        %v257 = vld [vmem:[#allocation5 + $0x30] sm:$0xf]
        %v258 = vld [vmem:[#allocation5 + $0x34] sm:$0xf]
        %v259 = vld [vmem:[#allocation5 + $0x38] sm:$0xf]
        %v260 = vld [vmem:[#allocation5 + $0x3c] sm:$0xf]
        %v277 = vunpack.c.l.b16 %v245
        %v278 = vunpack.c.l.b16 %v246
        %v279 = vunpack.c.l.b16 %v247
        %v280 = vunpack.c.l.b16 %v248
        %v281 = vunpack.c.l.b16 %v249
        %v282 = vunpack.c.l.b16 %v250
        %v283 = vunpack.c.l.b16 %v251
        %v284 = vunpack.c.l.b16 %v252
        %v285 = vunpack.c.l.b16 %v253
        %v286 = vunpack.c.l.b16 %v254
        %v287 = vunpack.c.l.b16 %v255
        %v288 = vunpack.c.l.b16 %v256
        %v289 = vunpack.c.l.b16 %v257
        %v290 = vunpack.c.l.b16 %v258
        %v291 = vunpack.c.l.b16 %v259
        %v292 = vunpack.c.l.b16 %v260
        %v293 = vpack.c.b16 %v278, %v277
        %v294 = vpack.c.b16 %v280, %v279
        %v295 = vpack.c.b16 %v282, %v281
        %v296 = vpack.c.b16 %v284, %v283
        %v297 = vpack.c.b16 %v286, %v285
        %v298 = vpack.c.b16 %v288, %v287
        %v299 = vpack.c.b16 %v290, %v289
        %v300 = vpack.c.b16 %v292, %v291
        %309 = vmatpush.bf16.msra.mxu0 %v300
        %310 = vmatpush.bf16.msra.mxu0 %v299
        %311 = vmatpush.bf16.msra.mxu0 %v298
        %312 = vmatpush.bf16.msra.mxu0 %v297
        %313 = vmatpush.bf16.msra.mxu0 %v296
        %314 = vmatpush.bf16.msra.mxu0 %v295
        %315 = vmatpush.bf16.msra.mxu0 %v294
        %316 = vmatpush.bf16.msra.mxu0 %v293
        %317 = vmatmul.bf16.gmra.mxu0 %v237
        %v318 = vpop.f32.mrf.mxu0
        %v319 = vadd.f32 0.0, %v318
        %v320 = vpop.f32.mrf.mxu0
        %v321 = vadd.f32 0.0, %v320
        %322 = vmatmul.bf16.gmra.mxu0 %v238
        %v323 = vpop.f32.mrf.mxu0
        %v324 = vadd.f32 0.0, %v323
        %v325 = vpop.f32.mrf.mxu0
        %v326 = vadd.f32 0.0, %v325
        %327 = vmatmul.bf16.gmra.mxu0 %v239
        %v328 = vpop.f32.mrf.mxu0
        %v329 = vadd.f32 0.0, %v328
        %v330 = vpop.f32.mrf.mxu0
        %v331 = vadd.f32 0.0, %v330
        %332 = vmatmul.bf16.gmra.mxu0 %v240
        %v333 = vpop.f32.mrf.mxu0
        %v334 = vadd.f32 0.0, %v333
        %v335 = vpop.f32.mrf.mxu0
        %v336 = vadd.f32 0.0, %v335
        %337 = vmatmul.bf16.gmra.mxu0 %v241
        %v338 = vpop.f32.mrf.mxu0
        %v339 = vadd.f32 0.0, %v338
        %v340 = vpop.f32.mrf.mxu0
        %v341 = vadd.f32 0.0, %v340
        %342 = vmatmul.bf16.gmra.mxu0 %v242
        %v343 = vpop.f32.mrf.mxu0
        %v344 = vadd.f32 0.0, %v343
        %v345 = vpop.f32.mrf.mxu0
        %v346 = vadd.f32 0.0, %v345
        %347 = vmatmul.bf16.gmra.mxu0 %v243
        %v348 = vpop.f32.mrf.mxu0
        %v349 = vadd.f32 0.0, %v348
        %v350 = vpop.f32.mrf.mxu0
        %v351 = vadd.f32 0.0, %v350
        %352 = vmatmul.bf16.gmra.mxu0 %v244
        %v353 = vpop.f32.mrf.mxu0
        %v354 = vadd.f32 0.0, %v353
        %v355 = vpop.f32.mrf.mxu0
        %v356 = vadd.f32 0.0, %v355
        %357 = vdwg.mxu0
        %358 = vst [vmem:[%s211] sm:$0xff] %v319
        %359 = vst [vmem:[%s211 + $0x8] sm:$0xff] %v321
        %360 = vst [vmem:[%s211 + $0x10] sm:$0xff] %v324
        %361 = vst [vmem:[%s211 + $0x18] sm:$0xff] %v326
        %362 = vst [vmem:[%s211 + $0x20] sm:$0xff] %v329
        %363 = vst [vmem:[%s211 + $0x28] sm:$0xff] %v331
        %364 = vst [vmem:[%s211 + $0x30] sm:$0xff] %v334
        %365 = vst [vmem:[%s211 + $0x38] sm:$0xff] %v336
        %366 = vst [vmem:[%s211 + $0x40] sm:$0xff] %v339
        %367 = vst [vmem:[%s211 + $0x48] sm:$0xff] %v341
        %368 = vst [vmem:[%s211 + $0x50] sm:$0xff] %v344
        %369 = vst [vmem:[%s211 + $0x58] sm:$0xff] %v346
        %370 = vst [vmem:[%s211 + $0x60] sm:$0xff] %v349
        %371 = vst [vmem:[%s211 + $0x68] sm:$0xff] %v351
        %372 = vst [vmem:[%s211 + $0x70] sm:$0xff] %v354
        %373 = vst [vmem:[%s211 + $0x78] sm:$0xff] %v356
        %v374 = vadd.f32 %v319, %v321
        %v375 = vadd.f32 %v374, %v324
        %v376 = vadd.f32 %v375, %v326
        %v377 = vadd.f32 %v376, %v329
        %v378 = vadd.f32 %v377, %v331
        %v379 = vadd.f32 %v378, %v334
        %v380 = vadd.f32 %v379, %v336
        %v381 = vadd.f32 %v380, %v339
        %v382 = vadd.f32 %v381, %v341
        %v383 = vadd.f32 %v382, %v344
        %v384 = vadd.f32 %v383, %v346
        %v385 = vadd.f32 %v384, %v349
        %v386 = vadd.f32 %v385, %v351
        %v387 = vadd.f32 %v386, %v354
        %v388 = vadd.f32 %v387, %v356
        %v389 = vrot.slane %v388, 4
        %v390 = vadd.f32 %v388, %v389
        %v391 = vrot.slane %v390, 2
        %v392 = vadd.f32 %v390, %v391
        %v393 = vrot.slane %v392, 1
        %v394 = vadd.f32 %v392, %v393
        %395 = vst [vmem:[%s218] sm:$0x1] %v394
        %v396 = vmul.f32 %v319, %v319
        %v397 = vmul.f32 %v321, %v321
        %v398 = vmul.f32 %v324, %v324
        %v399 = vmul.f32 %v326, %v326
        %v400 = vmul.f32 %v329, %v329
        %v401 = vmul.f32 %v331, %v331
        %v402 = vmul.f32 %v334, %v334
        %v403 = vmul.f32 %v336, %v336
        %v404 = vmul.f32 %v339, %v339
        %v405 = vmul.f32 %v341, %v341
        %v406 = vmul.f32 %v344, %v344
        %v407 = vmul.f32 %v346, %v346
        %v408 = vmul.f32 %v349, %v349
        %v409 = vmul.f32 %v351, %v351
        %v410 = vmul.f32 %v354, %v354
        %v411 = vmul.f32 %v356, %v356
        %v412 = vadd.f32 %v396, %v397
        %v413 = vadd.f32 %v412, %v398
        %v414 = vadd.f32 %v413, %v399
        %v415 = vadd.f32 %v414, %v400
        %v416 = vadd.f32 %v415, %v401
        %v417 = vadd.f32 %v416, %v402
        %v418 = vadd.f32 %v417, %v403
        %v419 = vadd.f32 %v418, %v404
        %v420 = vadd.f32 %v419, %v405
        %v421 = vadd.f32 %v420, %v406
        %v422 = vadd.f32 %v421, %v407
        %v423 = vadd.f32 %v422, %v408
        %v424 = vadd.f32 %v423, %v409
        %v425 = vadd.f32 %v424, %v410
        %v426 = vadd.f32 %v425, %v411
        %v427 = vrot.slane %v426, 4
        %v428 = vadd.f32 %v426, %v427
        %v429 = vrot.slane %v428, 2
        %v430 = vadd.f32 %v428, %v429
        %v431 = vrot.slane %v430, 1
        %v432 = vadd.f32 %v430, %v431
        %433 = vst [vmem:[%s218 + $0x1] sm:$0x1] %v432
        %s434 = sand.u32 %s80, 1
        %s435 = scalar_lea.sflag [#allocation4], %s434
        %s436 = sand.u32 %s80, 1
        %s437 = smul.addr %s436, 128
        %s438 = scalar_lea.vmem [#allocation7], %s437
        %s439 = sand.u32 %s106, 1
        %s440 = scalar_lea.sflag [#allocation9], %s439
        %s441 = sand.u32 %s106, 1
        %s442 = smul.addr %s441, 2
        %s443 = scalar_lea.vmem [#allocation8], %s442
        // Predicated region
        $region37: #{tpu_custom_call.1} parent=27 // pred_check
          %p444 = pneg %p90
        $region38: #{tpu_custom_call.1} parent=27 // pred_check_branch
          %446 = sbr.rel (%p444) target = $region40
        $region39: #{tpu_custom_call.1} parent=27 // pred_region
          %s447 = smul.u32 16, %s25
          %449 = vsyncadd %s435, 0
          %s450 = smul.addr %s447, 8
          %s451 = scalar_lea.hbm %s2, %s450
          %s452 = sshll.u32 %s438, 4
          %s453 = int_to_ptr.vmem [resolvable:$true] %s452
          %s454 = sshll.u32 %s451, 4
          %s455 = int_to_ptr.hbm [resolvable:$true] %s454
          %460 = dma.vmem_to_hbm [thread:$0]  %s453, 2048, %s455, %s435, 128, 128, 8
        $region40: #{tpu_custom_call.1} parent=27 // pred_fallthru
          _
        // Predicated region
        $region41: #{tpu_custom_call.1} parent=27 // pred_check
          %p461 = pneg %p116
        $region42: #{tpu_custom_call.1} parent=27 // pred_check_branch
          %463 = sbr.rel (%p461) target = $region44
        $region43: #{tpu_custom_call.1} parent=27 // pred_region
          %465 = vsyncadd %s440, 0
          %s466 = smul.addr %s25, 2
          %s467 = scalar_lea.hbm %s3, %s466
          %s469 = sshll.u32 %s443, 4
          %s470 = int_to_ptr.vmem [resolvable:$true] %s469
          %s471 = sshll.u32 %s467, 4
          %s472 = int_to_ptr.hbm [resolvable:$true] %s471
          %474 = dma.vmem_to_hbm [thread:$0]  %s470, 32, %s472, %s440
        $region44: #{tpu_custom_call.1} parent=27 // pred_fallthru
          _
      $region28: #{tpu_custom_call.1} parent=5 // pred_fallthru
        _
      %p475 = scmp.le.s32.totalorder 2, %s20
      // Predicated region
      $region45: #{tpu_custom_call.1} parent=5 // pred_check
        %p476 = pneg %p475
      $region46: #{tpu_custom_call.1} parent=5 // pred_check_branch
        %478 = sbr.rel (%p476) target = $region48
      $region47: #{tpu_custom_call.1} parent=5 // pred_region
        %s479 = ssub.s32 %s20, 2
        // Predicated region
        $region49: #{tpu_custom_call.1} parent=47 // pred_check
          %p480 = pneg %p96
        $region50: #{tpu_custom_call.1} parent=47 // pred_check_branch
          %482 = sbr.rel (%p480) target = $region52
        $region51: #{tpu_custom_call.1} parent=47 // pred_region
          %s483 = sand.u32 %s81, 1
          %s484 = scalar_lea.sflag [#allocation4], %s483
          %s485 = sand.u32 %s81, 1
          %s486 = smul.addr %s485, 128
          %s487 = scalar_lea.vmem [#allocation7], %s486
          %489 = dma.done %s484, 2048
        $region52: #{tpu_custom_call.1} parent=47 // pred_fallthru
          _
        // Predicated region
        $region53: #{tpu_custom_call.1} parent=47 // pred_check
          %p490 = pneg %p122
        $region54: #{tpu_custom_call.1} parent=47 // pred_check_branch
          %492 = sbr.rel (%p490) target = $region56
        $region55: #{tpu_custom_call.1} parent=47 // pred_region
          %s493 = sand.u32 %s107, 1
          %s494 = scalar_lea.sflag [#allocation9], %s493
          %s495 = sand.u32 %s107, 1
          %s496 = smul.addr %s495, 2
          %s497 = scalar_lea.vmem [#allocation8], %s496
          %499 = dma.done %s494, 32
        $region56: #{tpu_custom_call.1} parent=47 // pred_fallthru
          _
      $region48: #{tpu_custom_call.1} parent=5 // pred_fallthru
        _
    $region6: #{tpu_custom_call.1} parent=1 // loop_footer
      %s24 = sadd.s32 1, %s20
    $region7: #{tpu_custom_call.1} parent=1 // loop_footer_branch
      %19 = sbr.rel target = $region3
    $region8: #{tpu_custom_call.1} parent=1 // loop_exit
      _
    %500 = vsyncpa [#allocation3], 1
    %s501 = scalar_lea.sflag [#allocation3], 1
    %502 = vsyncpa %s501, 1
    %503 = vsyncpa [#allocation6], 1
    %504 = vsyncpa [#allocation4], 1
    %s505 = scalar_lea.sflag [#allocation4], 1
    %506 = vsyncpa %s505, 1
    %507 = vsyncpa [#allocation9], 1
    %s508 = scalar_lea.sflag [#allocation9], 1
    %509 = vsyncpa %s508, 1

</llo_original>
